<compile_context>
chip_gen: v5e
topology: v5e:2x2
jax: 0.10.0
libtpu: 0.0.40
codegen_flags: <defaults>
</compile_context>

<pallas_src>
import numpy as np
import jax
import jax.numpy as jnp
from jax.experimental import pallas as pl
from jax.experimental.pallas import tpu as pltpu


def _round_up(v, m):
    return ((v + m - 1) // m) * m


# ---------------------------------------------------------------------------
# Kernel 1: score = x @ coefficient, streamed over N (HBM-bound pass).
# ---------------------------------------------------------------------------
def _score_kernel(x_ref, w_ref, score_ref):
    # w_ref is the coefficient broadcast to 8 identical sublane rows; contract
    # the channel axis of both operands (NT matmul) on the MXU -> (8, tm).
    s8 = jax.lax.dot_general(
        w_ref[...], x_ref[...],
        dimension_numbers=(((1,), (1,)), ((), ())),
        preferred_element_type=jnp.float32,
        precision=jax.lax.Precision.HIGHEST,
    )
    score_ref[...] = s8[0:1, :]          # lane-dense (1, tm) store


def _pick_tm(n, c, itemsize):
    # Keep one (tm, C) x tile <= ~4 MiB so the double-buffered input stays well
    # under the default scoped-VMEM limit on every generation (v7x: 64 MiB
    # physical / 32 MiB scoped; v5e: 16 MiB default scoped).
    budget = 4 * 1024 * 1024
    tm = min(512, max(8, budget // max(1, c * itemsize)))
    tm = max(8, (tm // 8) * 8)
    n8 = _round_up(n, 8)
    if n8 <= tm:
        return n8                        # single block == full (padded) array
    return max(128, (tm // 128) * 128)   # multi-block: (1, tm) out needs tm % 128 == 0


def score_pallas(x, coeff):
    n, c = x.shape
    tm = _pick_tm(n, c, x.dtype.itemsize)
    n_pad = _round_up(n, tm)
    x_in = x if n_pad == n else jnp.pad(x, ((0, n_pad - n), (0, 0)))
    w8 = jnp.broadcast_to(coeff.reshape(1, c).astype(x.dtype), (8, c))
    score_row = pl.pallas_call(
        _score_kernel,
        grid=(n_pad // tm,),
        in_specs=[
            pl.BlockSpec((tm, c), lambda i: (i, 0)),   # streamed x tiles
            pl.BlockSpec((8, c), lambda i: (0, 0)),    # coefficient rows (resident)
        ],
        out_specs=pl.BlockSpec((1, tm), lambda i: (0, i)),   # lane-dense score slab
        out_shape=jax.ShapeDtypeStruct((1, n_pad), jnp.float32),
        compiler_params=pltpu.CompilerParams(
            dimension_semantics=("parallel",)),        # megacore-shardable
    )(x_in, w8)
    return score_row.reshape(-1)[:n]                   # (N,) f32


# ---------------------------------------------------------------------------
# Kernel 2: x[perm] * sigmoid(score[perm]) -- manual DMA row gather.
#   x stays in HBM (memory_space=pl.ANY); perm is scalar-prefetched into SMEM.
#   Cross-step double buffering: while tile t is gated and stored, tile t+1's
#   row DMAs are in flight into the other slot. One DMA semaphore per slot;
#   all SMEM perm reads happen before any .wait().
# ---------------------------------------------------------------------------
TK_MAX = 256
_MIN_DMA_ROW_BYTES = 512      # below this, per-row DMAs are descriptor-bound


def _gather_gate_kernel(perm_ref, score_ref, x_hbm, out_ref, xbuf, sems):
    j = pl.program_id(1)
    n_inner = pl.num_programs(1)
    t = pl.program_id(0) * n_inner + j            # flat tile index
    tk, _ = out_ref.shape
    slot = j % 2

    def issue(tile_idx, slot_idx):
        base = tile_idx * tk

        @pl.loop(0, tk)
        def _(r):
            row = perm_ref[base + r]
            pltpu.make_async_copy(
                x_hbm.at[pl.ds(row, 1), :],
                xbuf.at[slot_idx, pl.ds(r, 1), :],
                sems.at[slot_idx],
            ).start()

    @pl.when(j == 0)                              # prime this slice's pipeline
    def _():
        issue(t, slot)

    @pl.when(j + 1 < n_inner)                     # prefetch next tile BEFORE any wait
    def _():
        issue(t + 1, 1 - slot)

    # Drain this tile's slot. The wait descriptor only encodes the slot's
    # shared semaphore and the transfer size (dst row slice); each wait retires
    # exactly one of the size-matched row copies issued above.
    @pl.loop(0, tk)
    def _(r):
        pltpu.make_async_copy(
            x_hbm.at[pl.ds(0, 1), :],
            xbuf.at[slot, pl.ds(r, 1), :],
            sems.at[slot],
        ).wait()

    gate = jax.nn.sigmoid(score_ref[...])         # (tk, 1) f32 on the EUP
    out_ref[...] = (xbuf[slot] * gate.astype(out_ref.dtype)).astype(out_ref.dtype)


def _pick_tk(k, c, itemsize):
    budget = 4 * 1024 * 1024                      # cap for the (2, tk, C) staging buffer
    tk = min(TK_MAX, max(8, budget // max(1, 2 * c * itemsize)))
    tk = max(8, (tk // 8) * 8)
    # keep >= 2 tiles where possible so the outer "parallel" axis has work for
    # both v7x TensorCores (and padding stays bounded for small k)
    tk = min(tk, max(8, _round_up((k + 1) // 2, 8)))
    return tk


def gather_gate_pallas(x, score, perm, tk=None):
    n, c = x.shape
    assert n < 2 ** 31, "perm indices are int32"
    k = int(perm.shape[0])
    if k == 0:                                    # empty selection
        return jnp.zeros((0, c), dtype=x.dtype)
    itemsize = x.dtype.itemsize
    if c * itemsize < _MIN_DMA_ROW_BYTES:
        # Sub-512 B rows: per-row DMA gather is descriptor/latency bound, not
        # bandwidth bound -> fused XLA gather + gate is the right tool here.
        gate = jax.nn.sigmoid(jnp.take(score, perm).astype(jnp.float32))
        return jnp.take(x, perm, axis=0) * gate[:, None].astype(x.dtype)

    if tk is None:
        tk = _pick_tk(k, c, itemsize)
    n_outer = 2
    k_pad = _round_up(k, n_outer * tk)
    n_inner = (k_pad // tk) // n_outer

    perm_i32 = perm.astype(jnp.int32)
    perm_p = jnp.pad(perm_i32, (0, k_pad - k))                       # pad with row 0 (valid)
    score_perm = jnp.take(score, perm_i32).reshape(-1, 1).astype(jnp.float32)
    score_p = jnp.pad(score_perm, ((0, k_pad - k), (0, 0)))

    grid_spec = pltpu.PrefetchScalarGridSpec(
        num_scalar_prefetch=1,                                       # perm -> SMEM
        grid=(n_outer, n_inner),
        in_specs=[
            pl.BlockSpec((tk, 1), lambda i, j, perm_ref: (i * n_inner + j, 0)),
            pl.BlockSpec(memory_space=pl.ANY),                       # x stays in HBM
        ],
        out_specs=pl.BlockSpec((tk, c), lambda i, j, perm_ref: (i * n_inner + j, 0)),
        scratch_shapes=[
            pltpu.VMEM((2, tk, c), x.dtype),                         # double-buffered staging
            pltpu.SemaphoreType.DMA((2,)),                           # one sem per slot
        ],
    )
    out = pl.pallas_call(
        _gather_gate_kernel,
        grid_spec=grid_spec,
        out_shape=jax.ShapeDtypeStruct((k_pad, c), x.dtype),
        compiler_params=pltpu.CompilerParams(
            dimension_semantics=("parallel", "arbitrary")),
    )(perm_p, score_p, x)
    return out[:k]


# ---------------------------------------------------------------------------
# Top-k: stays ON DEVICE between the two Pallas kernels (no D2H round trip).
# Only shape-like bookkeeping (depends solely on `batch`) is done on the host.
# ---------------------------------------------------------------------------
def _batch_topk_layout(batch, ratio):
    batch = np.asarray(batch)
    batch_size = int(batch.max()) + 1
    num_nodes = np.bincount(batch, minlength=batch_size)
    max_num_nodes = int(num_nodes.max())
    cum = np.concatenate([[0], np.cumsum(num_nodes)[:-1]]).astype(np.int64)
    index = np.arange(batch.shape[0], dtype=np.int64) - cum[batch] + batch * max_num_nodes
    k = np.ceil(ratio * num_nodes.astype(np.float64)).astype(np.int64)
    return batch_size, max_num_nodes, cum, index, k


def topk_perm_device(score_flat, batch, ratio):
    # Same semantics as the PyTorch `topk`: per-graph descending order, keep the
    # first ceil(ratio * n_i). lax.top_k replaces the full argsort (cheaper).
    batch_size, max_nn, cum, index, k = _batch_topk_layout(batch, ratio)
    k_max = int(k.max())
    dense = jnp.full((batch_size * max_nn,), jnp.finfo(score_flat.dtype).min,
                     dtype=score_flat.dtype)
    dense = dense.at[jnp.asarray(index.astype(np.int32))].set(score_flat)
    dense = dense.reshape(batch_size, max_nn)
    _, order = jax.lax.top_k(dense, k_max)                           # descending
    perm_rows = order.astype(jnp.int32) + jnp.asarray(cum.astype(np.int32)).reshape(-1, 1)
    mask = np.concatenate(
        [np.arange(k[i], dtype=np.int64) + i * k_max for i in range(batch_size)])
    return perm_rows.reshape(-1)[jnp.asarray(mask.astype(np.int32))]


# NumPy mirror of the PyTorch `topk` (correctness reference only).
def topk_perm_numpy(score, ratio, batch):
    score = np.asarray(score)
    batch_size, max_nn, cum, index, k = _batch_topk_layout(batch, ratio)
    dense_x = np.full((batch_size * max_nn,), np.finfo(score.dtype).min, dtype=score.dtype)
    dense_x[index] = score
    dense_x = dense_x.reshape(batch_size, max_nn)
    perm = np.argsort(-dense_x, axis=-1, kind="stable")
    perm = (perm + cum.reshape(-1, 1)).reshape(-1)
    mask = np.concatenate(
        [np.arange(k[i], dtype=np.int64) + i * max_nn for i in range(batch_size)])
    return perm[mask]


def filter_adj(edge_index, edge_attr, perm, num_nodes):
    # TODO(synk): data-dependent output shape (boolean edge mask) has no static
    # Pallas equivalent; done on host with concrete indices.
    mask = np.full((num_nodes,), -1, dtype=np.int64)
    mask[np.asarray(perm)] = np.arange(perm.shape[0], dtype=np.int64)
    row, col = np.asarray(edge_index[0]), np.asarray(edge_index[1])
    row, col = mask[row], mask[col]
    keep = (row >= 0) & (col >= 0)
    row, col = row[keep], col[keep]
    edge_attr = None if edge_attr is None else np.asarray(edge_attr)[keep]
    return np.stack([row, col], axis=0), edge_attr


# ---------------------------------------------------------------------------
# gPool forward
# ---------------------------------------------------------------------------
def gpool_forward(x, edge_index, coefficient, ratio=0.8, edge_attr=None, batch=None):
    n = x.shape[0]
    if batch is None:
        batch = np.zeros((n,), dtype=np.int64)
    else:
        batch = np.asarray(batch)

    score = score_pallas(x, coefficient)             # (N,) f32  -- Pallas kernel 1
    perm = topk_perm_device(score, batch, ratio)     # device top-k
    x_out = gather_gate_pallas(x, score, perm)       # Pallas kernel 2 (gather + gate)

    perm_np = np.asarray(perm)                       # host copy only for adjacency filtering
    batch_out = batch[perm_np]
    edge_index_out, edge_attr_out = filter_adj(edge_index, edge_attr, perm_np, num_nodes=n)
    return x_out, edge_index_out, edge_attr_out, batch_out, perm_np


# ---------------------------------------------------------------------------
if __name__ == "__main__":
    key = jax.random.PRNGKey(0)
    k1, k2 = jax.random.split(key)

    N, C = 16, 128          # two graphs of 8 nodes each, 128 channels
    RATIO = 0.8

    x = jax.random.normal(k1, (N, C), dtype=jnp.float32)
    # Module __init__ zero-inits coefficient (shape (in_channels, 1)); use a
    # deterministic non-zero init so the score / top-k path is non-trivial.
    coefficient = 0.1 * jax.random.normal(k2, (C, 1), dtype=jnp.float32)

    batch = np.array([0] * 8 + [1] * 8, dtype=np.int64)
    rows, cols = [], []
    for g in range(2):                     # ring graph within each sub-graph
        off = 8 * g
        for i in range(8):
            rows.append(off + i)
            cols.append(off + (i + 1) % 8)
    edge_index = np.array([rows, cols], dtype=np.int64)

    x_out, ei_out, ea_out, batch_out, perm = gpool_forward(
        x, edge_index, coefficient, ratio=RATIO, batch=batch
    )
    x_out = jax.block_until_ready(x_out)

    # reference check (pure NumPy)
    x_np = np.asarray(x)
    coef_np = np.asarray(coefficient)
    ref_score = (x_np @ coef_np).reshape(-1)
    ref_perm = topk_perm_numpy(ref_score, RATIO, batch)
    np.testing.assert_array_equal(perm, ref_perm)

    ref_x = x_np[perm] * (1.0 / (1.0 + np.exp(-ref_score[perm]))).reshape(-1, 1)
    np.testing.assert_allclose(np.asarray(x_out), ref_x, rtol=1e-4, atol=1e-4)

    assert batch_out.shape[0] == perm.shape[0]
    assert ei_out.shape[0] == 2

    print("KERNEL_OK")
</pallas_src>

<mosaic_0001>
module attributes {stable_mosaic.version = 11 : i64} {
  func.func @_score_kernel(%arg0: i32, %arg1: memref<16x128xf32, #tpu.memory_space<vmem>>, %arg2: memref<8x128xf32, #tpu.memory_space<vmem>>, %arg3: memref<1x16xf32, #tpu.memory_space<vmem>>) attributes {dimension_semantics = [#tpu.dimension_semantics<parallel>], iteration_bounds = array<i64: 1>, scalar_prefetch = 0 : i64, scratch_operands = 0 : i64, tpu.core_type = #tpu.core_type<tc>, window_params = [{transform_indices = @transform_0, window_bounds = array<i64: 16, 128>}, {pipeline_mode = #tpu.pipeline_mode<synchronous>, transform_indices = @transform_1, window_bounds = array<i64: 8, 128>}, {transform_indices = @transform_2, window_bounds = array<i64: 1, 16>}]} {
    %c0 = arith.constant 0 : index
    %c0_0 = arith.constant 0 : index
    %0 = vector.load %arg2[%c0, %c0_0] : memref<8x128xf32, #tpu.memory_space<vmem>>, vector<8x128xf32>
    %c0_1 = arith.constant 0 : index
    %c0_2 = arith.constant 0 : index
    %1 = vector.load %arg1[%c0_1, %c0_2] : memref<16x128xf32, #tpu.memory_space<vmem>>, vector<16x128xf32>
    %cst = arith.constant dense<0.000000e+00> : vector<8x16xf32>
    %2 = tpu.matmul %0, %1, %cst {dimension_numbers = #tpu.dot_dimension_numbers<[1], [1], [0], [0], [0, 0, 1, 0], [], []>, precision = #tpu.contract_precision<fp32>} : vector<8x128xf32>, vector<16x128xf32>, vector<8x16xf32> -> vector<8x16xf32>
    %3 = vector.extract_strided_slice %2 {offsets = [0, 0], sizes = [1, 16], strides = [1, 1]} : vector<8x16xf32> to vector<1x16xf32>
    %c0_3 = arith.constant 0 : index
    %c0_4 = arith.constant 0 : index
    %4 = vector.load %arg3[%c0_3, %c0_4] : memref<1x16xf32, #tpu.memory_space<vmem>>, vector<1x16xf32>
    tpu.vector_store %arg3[%c0_3, %c0_4], %3 {strides = array<i32>} : memref<1x16xf32, #tpu.memory_space<vmem>>, vector<1x16xf32>,
    return
  }
  func.func @transform_0(%arg0: i32) -> (i32, i32) {
    %c0_i32 = arith.constant 0 : i32
    %c0_i32_0 = arith.constant 0 : i32
    return %arg0, %c0_i32 : i32, i32
  }
  func.func @transform_1(%arg0: i32) -> (i32, i32) {
    %c0_i32 = arith.constant 0 : i32
    %c0_i32_0 = arith.constant 0 : i32
    %c0_i32_1 = arith.constant 0 : i32
    return %c0_i32, %c0_i32_0 : i32, i32
  }
  func.func @transform_2(%arg0: i32) -> (i32, i32) {
    %c0_i32 = arith.constant 0 : i32
    %c0_i32_0 = arith.constant 0 : i32
    return %c0_i32, %arg0 : i32, i32
  }
}

</mosaic_0001>

<llo_original>
// kernel: tpu_custom_call.1
$region0: #{tpu_custom_call.1}
  #allocation0 [shape = 'u32[]', space=smem, size = 0x4, offset = 0x4, fixed_abs, tag = 'smem constant byte address 0x4 - core index']
  #allocation1 [shape = 'u32[72,128]{1,0:T(1,128)}', space=vmem, size = 0x9000, scoped, tag = 'internal scratch']
  %s0 = inlined_call_operand.hbm [shape: f32[16,128], index: 0, kind: input, shape index: {}]
  %s1 = inlined_call_operand.hbm [shape: f32[8,128], index: 1, kind: input, shape index: {}]
  %s2 = inlined_call_operand.hbm [shape: f32[1,16], index: 2, kind: output, shape index: {}]
  %s3 = sld [smem:[#allocation0]]
  $region26: #{tpu_custom_call.1} parent=0
    _
  %s5 = ssub.s32 1, %s3
  %s6 = scalar_select 0, %s5, %s3
  $region1: #{tpu_custom_call.1} parent=0
    #allocation2 [shape = 'u8[8192]{0}', space=vmem, size = 0x2000, scoped, tag = 'input window, operand 0, single buffered']
    #allocation3 [shape = 's32[1]{0}', space=sflag, size = 0x4, scoped, tag = 'scoped memory for tpu_custom_call.1']
    #allocation4 [shape = 's32[1]{0}', space=sflag, size = 0x4, scoped, tag = 'scoped memory for tpu_custom_call.1']
    #allocation5 [shape = 'u8[4096]{0}', space=vmem, size = 0x1000, scoped, tag = 'input window, operand 1, single buffered']
    #allocation6 [shape = 's32[1]{0}', space=sflag, size = 0x4, scoped, tag = 'scoped memory for tpu_custom_call.1']
    #allocation7 [shape = 'u8[512]{0}', space=vmem, size = 0x400, scoped, tag = 'output window, operand 0, single buffered']
    %7 = vsyncpa [#allocation3], 0
    %8 = vsyncpa [#allocation6], 0
    %9 = vsyncpa [#allocation4], 0
    // Predicated region
    $region2: #{tpu_custom_call.1} parent=1 // pred_check
      _
    $region3: #{tpu_custom_call.1} parent=1 // pred_check_branch
      %11 = sbr.rel (0) target = $region5
    $region4: #{tpu_custom_call.1} parent=1 // pred_region
      %13 = vsyncadd [#allocation3], 0
      %s14 = sshll.u32 %s0, 4
      %s15 = int_to_ptr.hbm [resolvable:$true] %s14
      %s16 = sshll.u32 [#allocation2], 4
      %s17 = int_to_ptr.vmem [resolvable:$true] %s16
      %22 = dma.hbm_to_vmem [thread:$0]  %s15, 256, %s17, [#allocation3], 128, 128, 8
    $region5: #{tpu_custom_call.1} parent=1 // pred_fallthru
      _
    // Predicated region
    $region6: #{tpu_custom_call.1} parent=1 // pred_check
      _
    $region7: #{tpu_custom_call.1} parent=1 // pred_check_branch
      %24 = sbr.rel (0) target = $region9
    $region8: #{tpu_custom_call.1} parent=1 // pred_region
      %26 = vsyncadd [#allocation6], 0
      %s28 = sshll.u32 %s1, 4
      %s29 = int_to_ptr.hbm [resolvable:$true] %s28
      %s30 = sshll.u32 [#allocation5], 4
      %s31 = int_to_ptr.vmem [resolvable:$true] %s30
      %33 = dma.hbm_to_vmem [thread:$0]  %s29, 128, %s31, [#allocation6]
    $region9: #{tpu_custom_call.1} parent=1 // pred_fallthru
      _
    // Predicated region
    $region10: #{tpu_custom_call.1} parent=1 // pred_check
      _
    $region11: #{tpu_custom_call.1} parent=1 // pred_check_branch
      %35 = sbr.rel (0) target = $region13
    $region12: #{tpu_custom_call.1} parent=1 // pred_region
      %37 = dma.done [#allocation3], 256
    $region13: #{tpu_custom_call.1} parent=1 // pred_fallthru
      _
    // Predicated region
    $region14: #{tpu_custom_call.1} parent=1 // pred_check
      _
    $region15: #{tpu_custom_call.1} parent=1 // pred_check_branch
      %39 = sbr.rel (0) target = $region17
    $region16: #{tpu_custom_call.1} parent=1 // pred_region
      %41 = dma.done [#allocation6], 128
    $region17: #{tpu_custom_call.1} parent=1 // pred_fallthru
      _
    %v42 = vld [vmem:[#allocation5] sm:$0xff]
    %v43 = vld [vmem:[#allocation2] sm:$0xff]
    %v44 = vld [vmem:[#allocation2 + $0x8] sm:$0xff]
    %45 = vmatpush.xpose.msra.mxu0 0.0
    %46 = vmatpush.xpose.msra.mxu0 0.0
    %47 = vmatpush.xpose.msra.mxu0 0.0
    %48 = vmatpush.xpose.msra.mxu0 0.0
    %49 = vmatpush.xpose.msra.mxu0 0.0
    %50 = vmatpush.xpose.msra.mxu0 0.0
    %51 = vmatpush.xpose.msra.mxu0 0.0
    %52 = vmatpush.xpose.msra.mxu0 0.0
    %53 = vmatpush.xpose.msra.mxu0 0.0
    %54 = vmatpush.xpose.msra.mxu0 0.0
    %55 = vmatpush.xpose.msra.mxu0 0.0
    %56 = vmatpush.xpose.msra.mxu0 0.0
    %57 = vmatpush.xpose.msra.mxu0 0.0
    %58 = vmatpush.xpose.msra.mxu0 0.0
    %v59 = vand.u32 %v44, 4294901760
    %60 = vmatpush.xpose.msra.mxu0 %v59
    %v61 = vand.u32 %v43, 4294901760
    %62 = vmatpush.xpose.msra.mxu0 %v61
    %v63 = vand.u32 %v42, 4294901760
    %v64 = vsub.f32 %v42, %v63
    %v65 = vand.u32 %v64, 4294901760
    %v66 = vsub.f32 %v64, %v65
    %v67 = vand.u32 %v66, 4294901760
    %68 = vmatmul.f32.gmra.mxu0 %v67
    %v69 = vpop.f32.mrf.mxu0
    %v70 = vadd.f32 0.0, %v69
    %71 = vdwg.mxu0
    %72 = vmatpush.xpose.msra.mxu0 0.0
    %73 = vmatpush.xpose.msra.mxu0 0.0
    %74 = vmatpush.xpose.msra.mxu0 0.0
    %75 = vmatpush.xpose.msra.mxu0 0.0
    %76 = vmatpush.xpose.msra.mxu0 0.0
    %77 = vmatpush.xpose.msra.mxu0 0.0
    %78 = vmatpush.xpose.msra.mxu0 0.0
    %79 = vmatpush.xpose.msra.mxu0 0.0
    %80 = vmatpush.xpose.msra.mxu0 0.0
    %81 = vmatpush.xpose.msra.mxu0 0.0
    %82 = vmatpush.xpose.msra.mxu0 0.0
    %83 = vmatpush.xpose.msra.mxu0 0.0
    %84 = vmatpush.xpose.msra.mxu0 0.0
    %85 = vmatpush.xpose.msra.mxu0 0.0
    %v86 = vand.u32 %v44, 4294901760
    %v87 = vsub.f32 %v44, %v86
    %v88 = vand.u32 %v87, 4294901760
    %v89 = vsub.f32 %v87, %v88
    %v90 = vand.u32 %v89, 4294901760
    %91 = vmatpush.xpose.msra.mxu0 %v90
    %v92 = vand.u32 %v43, 4294901760
    %v93 = vsub.f32 %v43, %v92
    %v94 = vand.u32 %v93, 4294901760
    %v95 = vsub.f32 %v93, %v94
    %v96 = vand.u32 %v95, 4294901760
    %97 = vmatpush.xpose.msra.mxu0 %v96
    %v98 = vand.u32 %v42, 4294901760
    %99 = vmatmul.f32.gmra.mxu0 %v98
    %v100 = vpop.f32.mrf.mxu0
    %v101 = vadd.f32 %v70, %v100
    %102 = vdwg.mxu0
    %103 = vmatpush.xpose.msra.mxu0 0.0
    %104 = vmatpush.xpose.msra.mxu0 0.0
    %105 = vmatpush.xpose.msra.mxu0 0.0
    %106 = vmatpush.xpose.msra.mxu0 0.0
    %107 = vmatpush.xpose.msra.mxu0 0.0
    %108 = vmatpush.xpose.msra.mxu0 0.0
    %109 = vmatpush.xpose.msra.mxu0 0.0
    %110 = vmatpush.xpose.msra.mxu0 0.0
    %111 = vmatpush.xpose.msra.mxu0 0.0
    %112 = vmatpush.xpose.msra.mxu0 0.0
    %113 = vmatpush.xpose.msra.mxu0 0.0
    %114 = vmatpush.xpose.msra.mxu0 0.0
    %115 = vmatpush.xpose.msra.mxu0 0.0
    %116 = vmatpush.xpose.msra.mxu0 0.0
    %v117 = vand.u32 %v44, 4294901760
    %v118 = vsub.f32 %v44, %v117
    %119 = vmatpush.xpose.msra.mxu0 %v118
    %v120 = vand.u32 %v43, 4294901760
    %v121 = vsub.f32 %v43, %v120
    %122 = vmatpush.xpose.msra.mxu0 %v121
    %v123 = vand.u32 %v42, 4294901760
    %v124 = vsub.f32 %v42, %v123
    %125 = vmatmul.f32.gmra.mxu0 %v124
    %v126 = vpop.f32.mrf.mxu0
    %v127 = vadd.f32 %v101, %v126
    %128 = vdwg.mxu0
    %129 = vmatpush.xpose.msra.mxu0 0.0
    %130 = vmatpush.xpose.msra.mxu0 0.0
    %131 = vmatpush.xpose.msra.mxu0 0.0
    %132 = vmatpush.xpose.msra.mxu0 0.0
    %133 = vmatpush.xpose.msra.mxu0 0.0
    %134 = vmatpush.xpose.msra.mxu0 0.0
    %135 = vmatpush.xpose.msra.mxu0 0.0
    %136 = vmatpush.xpose.msra.mxu0 0.0
    %137 = vmatpush.xpose.msra.mxu0 0.0
    %138 = vmatpush.xpose.msra.mxu0 0.0
    %139 = vmatpush.xpose.msra.mxu0 0.0
    %140 = vmatpush.xpose.msra.mxu0 0.0
    %141 = vmatpush.xpose.msra.mxu0 0.0
    %142 = vmatpush.xpose.msra.mxu0 0.0
    %v143 = vand.u32 %v44, 4294901760
    %144 = vmatpush.xpose.msra.mxu0 %v143
    %v145 = vand.u32 %v43, 4294901760
    %146 = vmatpush.xpose.msra.mxu0 %v145
    %v147 = vand.u32 %v42, 4294901760
    %v148 = vsub.f32 %v42, %v147
    %v149 = vand.u32 %v148, 4294901760
    %150 = vmatmul.f32.gmra.mxu0 %v149
    %v151 = vpop.f32.mrf.mxu0
    %v152 = vadd.f32 %v127, %v151
    %153 = vdwg.mxu0
    %154 = vmatpush.xpose.msra.mxu0 0.0
    %155 = vmatpush.xpose.msra.mxu0 0.0
    %156 = vmatpush.xpose.msra.mxu0 0.0
    %157 = vmatpush.xpose.msra.mxu0 0.0
    %158 = vmatpush.xpose.msra.mxu0 0.0
    %159 = vmatpush.xpose.msra.mxu0 0.0
    %160 = vmatpush.xpose.msra.mxu0 0.0
    %161 = vmatpush.xpose.msra.mxu0 0.0
    %162 = vmatpush.xpose.msra.mxu0 0.0
    %163 = vmatpush.xpose.msra.mxu0 0.0
    %164 = vmatpush.xpose.msra.mxu0 0.0
    %165 = vmatpush.xpose.msra.mxu0 0.0
    %166 = vmatpush.xpose.msra.mxu0 0.0
    %167 = vmatpush.xpose.msra.mxu0 0.0
    %v168 = vand.u32 %v44, 4294901760
    %v169 = vsub.f32 %v44, %v168
    %v170 = vand.u32 %v169, 4294901760
    %171 = vmatpush.xpose.msra.mxu0 %v170
    %v172 = vand.u32 %v43, 4294901760
    %v173 = vsub.f32 %v43, %v172
    %v174 = vand.u32 %v173, 4294901760
    %175 = vmatpush.xpose.msra.mxu0 %v174
    %v176 = vand.u32 %v42, 4294901760
    %177 = vmatmul.f32.gmra.mxu0 %v176
    %v178 = vpop.f32.mrf.mxu0
    %v179 = vadd.f32 %v152, %v178
    %180 = vdwg.mxu0
    %181 = vmatpush.xpose.msra.mxu0 0.0
    %182 = vmatpush.xpose.msra.mxu0 0.0
    %183 = vmatpush.xpose.msra.mxu0 0.0
    %184 = vmatpush.xpose.msra.mxu0 0.0
    %185 = vmatpush.xpose.msra.mxu0 0.0
    %186 = vmatpush.xpose.msra.mxu0 0.0
    %187 = vmatpush.xpose.msra.mxu0 0.0
    %188 = vmatpush.xpose.msra.mxu0 0.0
    %189 = vmatpush.xpose.msra.mxu0 0.0
    %190 = vmatpush.xpose.msra.mxu0 0.0
    %191 = vmatpush.xpose.msra.mxu0 0.0
    %192 = vmatpush.xpose.msra.mxu0 0.0
    %193 = vmatpush.xpose.msra.mxu0 0.0
    %194 = vmatpush.xpose.msra.mxu0 0.0
    %v195 = vand.u32 %v44, 4294901760
    %196 = vmatpush.xpose.msra.mxu0 %v195
    %v197 = vand.u32 %v43, 4294901760
    %198 = vmatpush.xpose.msra.mxu0 %v197
    %v199 = vand.u32 %v42, 4294901760
    %200 = vmatmul.f32.gmra.mxu0 %v199
    %v201 = vpop.f32.mrf.mxu0
    %v202 = vadd.f32 %v179, %v201
    %203 = vdwg.mxu0
    %vm204 = vcmask 122880
    %205 = vst.msk [vmem:[#allocation7] sm:$0x1] %vm204, %v202
    // Predicated region
    $region18: #{tpu_custom_call.1} parent=1 // pred_check
      _
    $region19: #{tpu_custom_call.1} parent=1 // pred_check_branch
      %207 = sbr.rel (0) target = $region21
    $region20: #{tpu_custom_call.1} parent=1 // pred_region
      %209 = vsyncadd [#allocation4], 0
      %s211 = sshll.u32 [#allocation7], 4
      %s212 = int_to_ptr.vmem [resolvable:$true] %s211
      %s213 = sshll.u32 %s2, 4
      %s214 = int_to_ptr.hbm [resolvable:$true] %s213
      %216 = dma.vmem_to_hbm [thread:$0]  %s212, 16, %s214, [#allocation4]
    $region21: #{tpu_custom_call.1} parent=1 // pred_fallthru
      _
    // Predicated region
    $region22: #{tpu_custom_call.1} parent=1 // pred_check
      _
    $region23: #{tpu_custom_call.1} parent=1 // pred_check_branch
      %218 = sbr.rel (0) target = $region25
    $region24: #{tpu_custom_call.1} parent=1 // pred_region
      %220 = dma.done [#allocation4], 16
    $region25: #{tpu_custom_call.1} parent=1 // pred_fallthru
      _
    %221 = vsyncpa [#allocation3], 1
    %222 = vsyncpa [#allocation6], 1
    %223 = vsyncpa [#allocation4], 1

</llo_original>
